<compile_context>
chip_gen: v6e
topology: v6e:2x2x1
jax: 0.10.0
libtpu: 0.0.40
codegen_flags: <defaults>
</compile_context>

<pallas_src>
import jax
import jax.numpy as jnp
from jax.experimental import pallas as pl
from jax.experimental.pallas import tpu as pltpu


def _round_up(x, m):
    return ((x + m - 1) // m) * m


def _cdiv(a, b):
    return (a + b - 1) // b


# ----------------------------------------------------------------------------
# Mode A: whole feature (K) dim in one block -> single matmul per tile.
def _kernel_fullk(x_ref, w_ref, b_ref, o_ref):
    o_ref[...] = (
        jnp.dot(x_ref[...], w_ref[...], preferred_element_type=jnp.float32)
        + b_ref[...]
    ).astype(o_ref.dtype)


# ----------------------------------------------------------------------------
# Mode B: K-tiled reduction (last grid axis, "arbitrary").
def _kernel_ktiled_f32out(x_ref, w_ref, b_ref, o_ref):
    # float32 output: accumulate directly into the resident output block
    # (its block index is constant across K) — no extra f32 scratch needed.
    k = pl.program_id(1)

    @pl.when(k == 0)
    def _():
        o_ref[...] = jnp.zeros_like(o_ref)

    o_ref[...] += jnp.dot(
        x_ref[...], w_ref[...], preferred_element_type=jnp.float32
    )

    @pl.when(k == pl.num_programs(1) - 1)
    def _():
        o_ref[...] += b_ref[...]


def _kernel_ktiled_acc(x_ref, w_ref, b_ref, o_ref, acc_ref):
    # Low-precision output: keep an f32 VMEM accumulator, cast once at the end.
    k = pl.program_id(1)

    @pl.when(k == 0)
    def _():
        acc_ref[...] = jnp.zeros_like(acc_ref)

    acc_ref[...] += jnp.dot(
        x_ref[...], w_ref[...], preferred_element_type=jnp.float32
    )

    @pl.when(k == pl.num_programs(1) - 1)
    def _():
        o_ref[...] = (acc_ref[...] + b_ref[...]).astype(o_ref.dtype)


def logreg_forward(seq, weight, bias, *, tm=512, tk=512,
                   vmem_budget_bytes=40 * 1024 * 1024):
    """nn.Linear forward: seq @ weight.T + bias.

    seq:    (N, ft_in)
    weight: (nb_classes, ft_in)
    bias:   (nb_classes,)
    """
    n, ft_in = seq.shape
    nb_classes = weight.shape[0]
    out_dtype = seq.dtype
    itemsize = jnp.dtype(out_dtype).itemsize
    # Sublane packing multiple for the second-minor (M) dim:
    # 8 for 4-byte, 16 for bf16/fp16, 32 for int8/fp8.
    sub = {4: 8, 2: 16, 1: 32}.get(itemsize, 8)

    # Lane-dense padded widths (last dims multiples of 128).
    c_pad = _round_up(max(nb_classes, 128), 128)
    k_full = _round_up(ft_in, 128)          # single-K-block width (minimal K pad)

    # ----- class (output-width) tiling: only when c_pad is large --------------
    # 256-multiples keep the 2x256x256 MXU on v6e/v7x fully fed if compute-bound;
    # also keeps W/out/acc tiles inside v7x's 64 MiB VMEM for huge class counts.
    if c_pad <= 2048:
        tn_eff = c_pad
    elif c_pad % 512 == 0:
        tn_eff = 512
    elif c_pad % 256 == 0:
        tn_eff = 256
    else:
        tn_eff = 128
    num_n = c_pad // tn_eff

    # ----- M tile --------------------------------------------------------------
    n_al = _round_up(n, sub)
    tm_eff = min(_round_up(tm, sub), n_al)
    # v7x megacore: give the "parallel" axes >= 2 tiles for decent-sized batches
    # so both TensorCores get work (irrelevant on single-TC v5e/v6e).
    if _cdiv(n_al, tm_eff) == 1 and num_n == 1 and n_al >= 256:
        tm_eff = _round_up(_cdiv(n_al, 2), sub)

    def _mode_a_bytes(tm_):
        # x / out double-buffered; W and bias counted double-buffered to be safe.
        return itemsize * (2 * tm_ * k_full + 2 * k_full * tn_eff
                           + 2 * tm_ * tn_eff + 2 * tn_eff)

    # Prefer Mode A; shrink the M tile (down to ~128 rows) before giving it up.
    tm_a = tm_eff
    while _mode_a_bytes(tm_a) > vmem_budget_bytes and tm_a > max(sub, 128):
        tm_a = max(_round_up(tm_a // 2, sub), max(sub, 128))
    use_mode_a = _mode_a_bytes(tm_a) <= vmem_budget_bytes

    if use_mode_a:
        tm_eff = tm_a
        k_pad = k_full
        num_k = 1
        tk_eff = k_full
    else:
        # Mode B: pick tk to minimize K padding (multiple of 128 lanes).
        num_k = _cdiv(k_full, max(128, _round_up(tk, 128)))
        tk_eff = _round_up(_cdiv(k_full, num_k), 128)
        k_pad = num_k * tk_eff

    n_pad = _round_up(n, tm_eff)
    num_m = n_pad // tm_eff

    # ----- one-time layout plumbing (skip copies when nothing needs padding) ---
    if n_pad == n and k_pad == ft_in:
        x_p = seq
    else:
        x_p = jnp.pad(seq, ((0, n_pad - n), (0, k_pad - ft_in)))
    w_t = weight.T  # (ft_in, nb_classes) — MXU consumes directly, no in-kernel transpose
    if k_pad == ft_in and c_pad == nb_classes:
        w_p = w_t
    else:
        w_p = jnp.pad(w_t, ((0, k_pad - ft_in), (0, c_pad - nb_classes)))
    b_p = bias if c_pad == nb_classes else jnp.pad(bias, (0, c_pad - nb_classes))
    b_p = b_p.reshape(1, c_pad)

    compiler_params = pltpu.CompilerParams(
        dimension_semantics=(("parallel", "parallel") if use_mode_a
                             else ("parallel", "arbitrary")),
        vmem_limit_bytes=48 * 1024 * 1024,  # explicit; safe on v5e/v6e/v7x
    )

    if use_mode_a:
        cost = pl.CostEstimate(
            flops=2 * n_pad * k_pad * c_pad,
            transcendentals=0,
            # W and bias fetched once; x re-read once per class tile.
            bytes_accessed=itemsize * (n_pad * k_pad * num_n + k_pad * c_pad
                                       + n_pad * c_pad + c_pad),
        )
        grid_spec = pltpu.PrefetchScalarGridSpec(
            num_scalar_prefetch=0,
            # Class tiles OUTER, M tiles INNER: W's block index is constant over
            # the inner M sweep, so each W column block is DMA'd exactly once.
            grid=(num_n, num_m),
            in_specs=[
                pl.BlockSpec((tm_eff, k_pad), lambda j, i: (i, 0)),   # x
                pl.BlockSpec((k_pad, tn_eff), lambda j, i: (0, j)),   # W (resident over M)
                pl.BlockSpec((1, tn_eff), lambda j, i: (0, j)),       # bias
            ],
            out_specs=pl.BlockSpec((tm_eff, tn_eff), lambda j, i: (i, j)),
        )
        kernel = _kernel_fullk
    else:
        f32_out = jnp.dtype(out_dtype) == jnp.dtype(jnp.float32)
        cost = pl.CostEstimate(
            flops=2 * n_pad * k_pad * c_pad,
            transcendentals=0,
            # W is re-streamed once per M tile in this fallback.
            bytes_accessed=itemsize * (n_pad * k_pad + num_m * k_pad * c_pad
                                       + n_pad * c_pad + c_pad),
        )
        grid_spec = pltpu.PrefetchScalarGridSpec(
            num_scalar_prefetch=0,
            grid=(num_m, num_k),  # reduction (K) axis last
            in_specs=[
                pl.BlockSpec((tm_eff, tk_eff), lambda i, k: (i, k)),  # x tile
                pl.BlockSpec((tk_eff, c_pad), lambda i, k: (k, 0)),   # W tile
                pl.BlockSpec((1, c_pad), lambda i, k: (0, 0)),        # bias
            ],
            out_specs=pl.BlockSpec((tm_eff, c_pad), lambda i, k: (i, 0)),
            scratch_shapes=([] if f32_out
                            else [pltpu.VMEM((tm_eff, c_pad), jnp.float32)]),
        )
        kernel = _kernel_ktiled_f32out if f32_out else _kernel_ktiled_acc

    out_p = pl.pallas_call(
        kernel,
        out_shape=jax.ShapeDtypeStruct((n_pad, c_pad), out_dtype),
        grid_spec=grid_spec,
        compiler_params=compiler_params,
        cost_estimate=cost,
    )(x_p, w_p, b_p)

    # Strip the zero padding back off in plain JAX.
    return out_p[:n, :nb_classes]


def xavier_uniform(key, shape, dtype=jnp.float32):
    # Matches torch.nn.init.xavier_uniform_ for a (fan_out, fan_in) weight.
    fan_out, fan_in = shape
    limit = jnp.sqrt(6.0 / (fan_in + fan_out))
    return jax.random.uniform(key, shape, dtype, minval=-limit, maxval=limit)


if __name__ == "__main__":
    key = jax.random.PRNGKey(0)
    k_x, k_w = jax.random.split(key)

    batch = 8
    ft_in = 32
    nb_classes = 16

    seq = jax.random.normal(k_x, (batch, ft_in), dtype=jnp.float32)
    weight = xavier_uniform(k_w, (nb_classes, ft_in))   # weights_init: xavier_uniform_
    bias = jnp.zeros((nb_classes,), dtype=jnp.float32)  # weights_init: bias fill 0.0

    out = logreg_forward(seq, weight, bias)
    out = jax.block_until_ready(out)

    # Sanity check against plain-JAX reference.
    ref = seq @ weight.T + bias
    assert out.shape == (batch, nb_classes)
    assert jnp.allclose(out, ref, atol=1e-5, rtol=1e-5)

    print("KERNEL_OK")
</pallas_src>

<mosaic_0001>
module attributes {stable_mosaic.version = 11 : i64} {
  func.func @_kernel_fullk(%arg0: i32, %arg1: i32, %arg2: memref<8x128xf32, #tpu.memory_space<vmem>>, %arg3: memref<128x128xf32, #tpu.memory_space<vmem>>, %arg4: memref<1x128xf32, #tpu.memory_space<vmem>>, %arg5: memref<8x128xf32, #tpu.memory_space<vmem>>) attributes {dimension_semantics = [#tpu.dimension_semantics<parallel>, #tpu.dimension_semantics<parallel>], iteration_bounds = array<i64: 1, 1>, scalar_prefetch = 0 : i64, scratch_operands = 0 : i64, tpu.core_type = #tpu.core_type<tc>, window_params = [{transform_indices = @transform_0, window_bounds = array<i64: 8, 128>}, {transform_indices = @transform_1, window_bounds = array<i64: 128, 128>}, {transform_indices = @transform_2, window_bounds = array<i64: 1, 128>}, {transform_indices = @transform_3, window_bounds = array<i64: 8, 128>}]} {
    %c0 = arith.constant 0 : index
    %c0_0 = arith.constant 0 : index
    %0 = vector.load %arg2[%c0, %c0_0] : memref<8x128xf32, #tpu.memory_space<vmem>>, vector<8x128xf32>
    %c0_1 = arith.constant 0 : index
    %c0_2 = arith.constant 0 : index
    %1 = vector.load %arg3[%c0_1, %c0_2] : memref<128x128xf32, #tpu.memory_space<vmem>>, vector<128x128xf32>
    %cst = arith.constant dense<0.000000e+00> : vector<8x128xf32>
    %2 = tpu.matmul %0, %1, %cst {dimension_numbers = #tpu.dot_dimension_numbers<[1], [0], [0], [1], [0, 0, 1, 1], [], []>} : vector<8x128xf32>, vector<128x128xf32>, vector<8x128xf32> -> vector<8x128xf32>
    %c0_3 = arith.constant 0 : index
    %c0_4 = arith.constant 0 : index
    %3 = vector.load %arg4[%c0_3, %c0_4] : memref<1x128xf32, #tpu.memory_space<vmem>>, vector<1x128xf32>
    %4 = vector.broadcast %3 : vector<1x128xf32> to vector<8x128xf32>
    %5 = arith.addf %2, %4 : vector<8x128xf32>
    %c0_5 = arith.constant 0 : index
    %c0_6 = arith.constant 0 : index
    %6 = vector.load %arg5[%c0_5, %c0_6] : memref<8x128xf32, #tpu.memory_space<vmem>>, vector<8x128xf32>
    tpu.vector_store %arg5[%c0_5, %c0_6], %5 {strides = array<i32>} : memref<8x128xf32, #tpu.memory_space<vmem>>, vector<8x128xf32>,
    return
  }
  func.func @transform_0(%arg0: i32, %arg1: i32) -> (i32, i32) {
    %c0_i32 = arith.constant 0 : i32
    %c0_i32_0 = arith.constant 0 : i32
    return %arg1, %c0_i32 : i32, i32
  }
  func.func @transform_1(%arg0: i32, %arg1: i32) -> (i32, i32) {
    %c0_i32 = arith.constant 0 : i32
    %c0_i32_0 = arith.constant 0 : i32
    return %c0_i32, %arg0 : i32, i32
  }
  func.func @transform_2(%arg0: i32, %arg1: i32) -> (i32, i32) {
    %c0_i32 = arith.constant 0 : i32
    %c0_i32_0 = arith.constant 0 : i32
    return %c0_i32, %arg0 : i32, i32
  }
  func.func @transform_3(%arg0: i32, %arg1: i32) -> (i32, i32) {
    %c0_i32 = arith.constant 0 : i32
    return %arg1, %arg0 : i32, i32
  }
}

</mosaic_0001>

<llo_original>
// kernel: tpu_custom_call.1
$region0: #{tpu_custom_call.1}
  #allocation0 [shape = 'u32[]', space=smem, size = 0x4, offset = 0x4, fixed_abs, tag = 'smem constant byte address 0x4 - core index']
  #allocation1 [shape = 'u32[144,128]{1,0:T(1,128)}', space=vmem, size = 0x12000, scoped, tag = 'internal scratch']
  %s0 = inlined_call_operand.hbm [shape: f32[8,128], index: 0, kind: input, shape index: {}]
  %s1 = inlined_call_operand.hbm [shape: f32[128,128], index: 1, kind: input, shape index: {}]
  %s2 = inlined_call_operand.vmem [shape: f32[1,128], index: 2, kind: input, shape index: {}]
  %s3 = inlined_call_operand.hbm [shape: f32[8,128], index: 3, kind: output, shape index: {}]
  %s4 = sld [smem:[#allocation0]]
  $region30: #{tpu_custom_call.1} parent=0
    _
  %s6 = ssub.s32 1, %s4
  %s7 = scalar_select 0, %s6, %s4
  $region1: #{tpu_custom_call.1} parent=0
    #allocation2 [shape = 'u8[4096]{0}', space=vmem, size = 0x1000, scoped, tag = 'input window, operand 0, single buffered']
    #allocation3 [shape = 's32[1]{0}', space=sflag, size = 0x4, scoped, tag = 'scoped memory for tpu_custom_call.1']
    #allocation4 [shape = 's32[1]{0}', space=sflag, size = 0x4, scoped, tag = 'scoped memory for tpu_custom_call.1']
    #allocation5 [shape = 'u8[65536]{0}', space=vmem, size = 0x10000, scoped, tag = 'input window, operand 1, single buffered']
    #allocation6 [shape = 's32[1]{0}', space=sflag, size = 0x4, scoped, tag = 'scoped memory for tpu_custom_call.1']
    #allocation7 [shape = 'u8[4096]{0}', space=vmem, size = 0x1000, scoped, tag = 'output window, operand 0, single buffered']
    %8 = vsyncpa [#allocation3], 0
    %9 = vsyncpa [#allocation6], 0
    %10 = vsyncpa [#allocation4], 0
    // Predicated region
    $region2: #{tpu_custom_call.1} parent=1 // pred_check
      _
    $region3: #{tpu_custom_call.1} parent=1 // pred_check_branch
      %12 = sbr.rel (0) target = $region5
    $region4: #{tpu_custom_call.1} parent=1 // pred_region
      %s14 = ssub.s32 128, 128
      %15 = vsyncadd [#allocation3], %s14
      %s17 = sshll.u32 [#allocation2], 4
      %s18 = int_to_ptr.vmem [resolvable:$true] %s17
      %20 = dma.hbm_to_vmem [thread:$0]  %s0, 128, %s18, [#allocation3]
    $region5: #{tpu_custom_call.1} parent=1 // pred_fallthru
      _
    // Predicated region
    $region6: #{tpu_custom_call.1} parent=1 // pred_check
      _
    $region7: #{tpu_custom_call.1} parent=1 // pred_check_branch
      %22 = sbr.rel (0) target = $region9
    $region8: #{tpu_custom_call.1} parent=1 // pred_region
      %s24 = ssub.s32 2048, 2048
      %25 = vsyncadd [#allocation6], %s24
      %s26 = sshll.u32 [#allocation5], 4
      %s27 = int_to_ptr.vmem [resolvable:$true] %s26
      %32 = dma.hbm_to_vmem [thread:$0]  %s1, 2048, %s27, [#allocation6], 128, 128, 8
    $region9: #{tpu_custom_call.1} parent=1 // pred_fallthru
      _
    // Predicated region
    $region10: #{tpu_custom_call.1} parent=1 // pred_check
      _
    $region11: #{tpu_custom_call.1} parent=1 // pred_check_branch
      %34 = sbr.rel (0) target = $region13
    $region12: #{tpu_custom_call.1} parent=1 // pred_region
      _
    $region13: #{tpu_custom_call.1} parent=1 // pred_fallthru
      _
    // Predicated region
    $region14: #{tpu_custom_call.1} parent=1 // pred_check
      _
    $region15: #{tpu_custom_call.1} parent=1 // pred_check_branch
      %36 = sbr.rel (0) target = $region17
    $region16: #{tpu_custom_call.1} parent=1 // pred_region
      %37 = dma.done [#allocation3], 128
    $region17: #{tpu_custom_call.1} parent=1 // pred_fallthru
      _
    // Predicated region
    $region18: #{tpu_custom_call.1} parent=1 // pred_check
      _
    $region19: #{tpu_custom_call.1} parent=1 // pred_check_branch
      %39 = sbr.rel (0) target = $region21
    $region20: #{tpu_custom_call.1} parent=1 // pred_region
      %40 = dma.done [#allocation6], 2048
    $region21: #{tpu_custom_call.1} parent=1 // pred_fallthru
      _
    %v41 = vld [vmem:[#allocation2] sm:$0xff]
    %v42 = vld [vmem:[#allocation5] sm:$0xff]
    %v43 = vld [vmem:[#allocation5 + $0x8] sm:$0xff]
    %v44 = vld [vmem:[#allocation5 + $0x10] sm:$0xff]
    %v45 = vld [vmem:[#allocation5 + $0x18] sm:$0xff]
    %v46 = vld [vmem:[#allocation5 + $0x20] sm:$0xff]
    %v47 = vld [vmem:[#allocation5 + $0x28] sm:$0xff]
    %v48 = vld [vmem:[#allocation5 + $0x30] sm:$0xff]
    %v49 = vld [vmem:[#allocation5 + $0x38] sm:$0xff]
    %v50 = vld [vmem:[#allocation5 + $0x40] sm:$0xff]
    %v51 = vld [vmem:[#allocation5 + $0x48] sm:$0xff]
    %v52 = vld [vmem:[#allocation5 + $0x50] sm:$0xff]
    %v53 = vld [vmem:[#allocation5 + $0x58] sm:$0xff]
    %v54 = vld [vmem:[#allocation5 + $0x60] sm:$0xff]
    %v55 = vld [vmem:[#allocation5 + $0x68] sm:$0xff]
    %v56 = vld [vmem:[#allocation5 + $0x70] sm:$0xff]
    %v57 = vld [vmem:[#allocation5 + $0x78] sm:$0xff]
    %v58 = vld [vmem:[%s2] sm:$0x1]
    %v60 = vlaneseq
    %v61 = vshrl.u32 %v60, 7
    %v62 = vsub.s32 0, %v61
    %v63 = vrot.slane %v58, %v62
    %65 = vmatprep.subr.mxu0 0.0
    %66 = vmatpush1.msra.mxu0 %v57
    %67 = vmatprep.subr.mxu0 0.0
    %68 = vmatpush1.msra.mxu0 %v56
    %69 = vmatprep.subr.mxu0 0.0
    %70 = vmatpush1.msra.mxu0 %v55
    %71 = vmatprep.subr.mxu0 0.0
    %72 = vmatpush1.msra.mxu0 %v54
    %73 = vmatprep.subr.mxu0 0.0
    %74 = vmatpush1.msra.mxu0 %v53
    %75 = vmatprep.subr.mxu0 0.0
    %76 = vmatpush1.msra.mxu0 %v52
    %77 = vmatprep.subr.mxu0 0.0
    %78 = vmatpush1.msra.mxu0 %v51
    %79 = vmatprep.subr.mxu0 0.0
    %80 = vmatpush1.msra.mxu0 %v50
    %81 = vmatprep.subr.mxu0 0.0
    %82 = vmatpush1.msra.mxu0 %v49
    %83 = vmatprep.subr.mxu0 0.0
    %84 = vmatpush1.msra.mxu0 %v48
    %85 = vmatprep.subr.mxu0 0.0
    %86 = vmatpush1.msra.mxu0 %v47
    %87 = vmatprep.subr.mxu0 0.0
    %88 = vmatpush1.msra.mxu0 %v46
    %89 = vmatprep.subr.mxu0 0.0
    %90 = vmatpush1.msra.mxu0 %v45
    %91 = vmatprep.subr.mxu0 0.0
    %92 = vmatpush1.msra.mxu0 %v44
    %93 = vmatprep.subr.mxu0 0.0
    %94 = vmatpush1.msra.mxu0 %v43
    %95 = vmatprep.subr.mxu0 0.0
    %96 = vmatpush1.msra.mxu0 %v42
    %97 = vmatprep.subr.mxu0 0.0
    %98 = vmatpush2.msra.mxu0 0.0
    %99 = vmatprep.subr.mxu0 0.0
    %100 = vmatpush2.msra.mxu0 0.0
    %101 = vmatprep.subr.mxu0 0.0
    %102 = vmatpush2.msra.mxu0 0.0
    %103 = vmatprep.subr.mxu0 0.0
    %104 = vmatpush2.msra.mxu0 0.0
    %105 = vmatprep.subr.mxu0 0.0
    %106 = vmatpush2.msra.mxu0 0.0
    %107 = vmatprep.subr.mxu0 0.0
    %108 = vmatpush2.msra.mxu0 0.0
    %109 = vmatprep.subr.mxu0 0.0
    %110 = vmatpush2.msra.mxu0 0.0
    %111 = vmatprep.subr.mxu0 0.0
    %112 = vmatpush2.msra.mxu0 0.0
    %113 = vmatprep.subr.mxu0 0.0
    %114 = vmatpush2.msra.mxu0 0.0
    %115 = vmatprep.subr.mxu0 0.0
    %116 = vmatpush2.msra.mxu0 0.0
    %117 = vmatprep.subr.mxu0 0.0
    %118 = vmatpush2.msra.mxu0 0.0
    %119 = vmatprep.subr.mxu0 0.0
    %120 = vmatpush2.msra.mxu0 0.0
    %121 = vmatprep.subr.mxu0 0.0
    %122 = vmatpush2.msra.mxu0 0.0
    %123 = vmatprep.subr.mxu0 0.0
    %124 = vmatpush2.msra.mxu0 0.0
    %125 = vmatprep.subr.mxu0 0.0
    %126 = vmatpush2.msra.mxu0 0.0
    %127 = vmatprep.subr.mxu0 0.0
    %128 = vmatpush2.msra.mxu0 0.0
    %129 = vmatprep.mubr.f32.mxu0 0.0
    %130 = vmatmul.mubr.f32.gmra.mxu0 %v41
    %v131 = vpop.f32.mrf.mxu0
    %v132 = vadd.f32 %v63, %v131
    %v133 = vpop.f32.mrf.mxu0
    %134 = vdwg.mxu0
    %135 = vst [vmem:[#allocation7] sm:$0xff] %v132
    // Predicated region
    $region22: #{tpu_custom_call.1} parent=1 // pred_check
      _
    $region23: #{tpu_custom_call.1} parent=1 // pred_check_branch
      %137 = sbr.rel (0) target = $region25
    $region24: #{tpu_custom_call.1} parent=1 // pred_region
      %s139 = ssub.s32 128, 128
      %140 = vsyncadd [#allocation4], %s139
      %s142 = sshll.u32 [#allocation7], 4
      %s143 = int_to_ptr.vmem [resolvable:$true] %s142
      %145 = dma.vmem_to_hbm [thread:$0]  %s143, 128, %s3, [#allocation4]
    $region25: #{tpu_custom_call.1} parent=1 // pred_fallthru
      _
    // Predicated region
    $region26: #{tpu_custom_call.1} parent=1 // pred_check
      _
    $region27: #{tpu_custom_call.1} parent=1 // pred_check_branch
      %147 = sbr.rel (0) target = $region29
    $region28: #{tpu_custom_call.1} parent=1 // pred_region
      %148 = dma.done [#allocation4], 128
    $region29: #{tpu_custom_call.1} parent=1 // pred_fallthru
      _
    %149 = vsyncpa [#allocation3], 1
    %150 = vsyncpa [#allocation6], 1
    %151 = vsyncpa [#allocation4], 1

</llo_original>
